<compile_context>
chip_gen: v7x
topology: tpu7x:2x2x1
jax: 0.10.0
libtpu: 0.0.40
codegen_flags: <defaults>
</compile_context>

<pallas_src>
import math

import jax
import jax.numpy as jnp
from jax.experimental import pallas as pl
from jax.experimental.pallas import tpu as pltpu

HEADS = 4
D_MODEL = 32
SEQ = 8
BATCH = 2


# ----------------------------------------------------------------------------
# Kernel factory: one grid step = one batch element.
# ----------------------------------------------------------------------------
def _make_mha_kernel(T, D, H, has_mask):
    DH = D // H
    D3 = 3 * D

    def kernel(*refs):
        if has_mask:
            x_ref, w_ref, b_ref, mask_ref, out_ref = refs
        else:
            x_ref, w_ref, b_ref, out_ref = refs
            mask_ref = None

        # --- fused Q/K/V projection: (T, 3D) @ blockdiag(wq*s, wk, wv) ---
        qkv = (jnp.dot(x_ref[...], w_ref[0:D3, :],
                       preferred_element_type=jnp.float32)
               + b_ref[0:1, 0:D3])                       # (T, 3D), Q pre-scaled

        # --- per-head 2-D attention on static lane slices ---
        ctx_heads = []
        for h in range(H):
            qh = qkv[:, h * DH:(h + 1) * DH]             # (T, DH)
            kh = qkv[:, D + h * DH:D + (h + 1) * DH]     # (T, DH)
            vh = qkv[:, 2 * D + h * DH:2 * D + (h + 1) * DH]

            # s = qh @ kh.T without an explicit transpose
            s = jax.lax.dot_general(qh, kh, (((1,), (1,)), ((), ())),
                                    preferred_element_type=jnp.float32)  # (T, T)
            if mask_ref is not None:
                s = s + mask_ref[...]
            s = s - jnp.max(s, axis=-1, keepdims=True)
            p = jnp.exp(s)
            p = p * pl.reciprocal(jnp.sum(p, axis=-1, keepdims=True),
                                  approx=False)           # exact, per review
            ctx_heads.append(jnp.dot(p, vh,
                                     preferred_element_type=jnp.float32))

        ctx = jnp.concatenate(ctx_heads, axis=-1)          # (T, D)

        # --- output projection (wo lives at rows [3D:4D, :D] of the slab) ---
        out_ref[...] = (jnp.dot(ctx, w_ref[D3:D3 + D, 0:D],
                                preferred_element_type=jnp.float32)
                        + b_ref[0:1, D3:D3 + D])

    return kernel


# ----------------------------------------------------------------------------
# Wrapper: packs operands into lane-dense slabs and launches the kernel.
# ----------------------------------------------------------------------------
def multi_head_attention(query, key, value, params, mask=None):
    """query/key/value: (B, T, D) float32; mask: (Tq, Tk) additive or None."""
    B, Tq, D = query.shape
    Tk = key.shape[1]
    H = HEADS
    DH = D // H
    assert D % H == 0
    # Fused block-diagonal QKV packs q/k/v along lanes -> equal row counts.
    assert Tq == Tk == value.shape[1], \
        "fused QKV path requires equal query/key/value sequence lengths"
    T = Tq
    scale = 1.0 / math.sqrt(DH)

    # Activations: lane-concat [q | k | v] -> (B*T, 3D)
    x_cat = jnp.concatenate([query.reshape(B * T, D),
                             key.reshape(B * T, D),
                             value.reshape(B * T, D)],
                            axis=-1).astype(jnp.float32)

    # One weight slab (4D, 3D) = (128, 96):
    #   rows [0:3D]       block-diag(wq * 1/sqrt(DH), wk, wv)
    #   rows [3D:4D, :D]  wo
    w_slab = jnp.zeros((4 * D, 3 * D), jnp.float32)
    w_slab = w_slab.at[0:D, 0:D].set(params["wq"].astype(jnp.float32) * scale)
    w_slab = w_slab.at[D:2 * D, D:2 * D].set(params["wk"].astype(jnp.float32))
    w_slab = w_slab.at[2 * D:3 * D, 2 * D:3 * D].set(
        params["wv"].astype(jnp.float32))
    w_slab = w_slab.at[3 * D:4 * D, 0:D].set(params["wo"].astype(jnp.float32))

    # One bias slab (1, 4D) = (1, 128): [bq*scale | bk | bv | bo]
    b_slab = jnp.concatenate(
        [params["bq"].reshape(1, D) * scale,
         params["bk"].reshape(1, D),
         params["bv"].reshape(1, D),
         params["bo"].reshape(1, D)], axis=-1).astype(jnp.float32)

    has_mask = mask is not None
    operands = [x_cat, w_slab, b_slab]
    in_specs = [
        pl.BlockSpec((T, 3 * D), lambda b: (b, 0)),        # per-batch slab
        pl.BlockSpec((4 * D, 3 * D), lambda b: (0, 0)),    # shared weights
        pl.BlockSpec((1, 4 * D), lambda b: (0, 0)),        # shared biases
    ]
    if has_mask:
        # TODO(synk): only a broadcast 2-D (Tq, Tk) additive mask is supported;
        # the torch reference also accepts (B*H, Tq, Tk) masks.
        mask = jnp.asarray(mask, jnp.float32)
        assert mask.shape == (T, T)
        operands.append(mask)
        in_specs.append(pl.BlockSpec((T, T), lambda b: (0, 0)))

    # Advisory cost estimate for XLA scheduling around the custom call.
    flops = (2 * B * T * (3 * D) * (3 * D)        # fused QKV projection
             + 2 * 2 * B * H * T * T * DH         # scores + context
             + 2 * B * T * D * D)                 # output projection
    bytes_accessed = int(sum(int(a.size) * a.dtype.itemsize for a in operands)
                         + B * T * D * 4)
    cost = pl.CostEstimate(flops=flops, transcendentals=B * H * T * T,
                           bytes_accessed=bytes_accessed)

    kernel = _make_mha_kernel(T, D, H, has_mask)
    out2d = pl.pallas_call(
        kernel,
        grid=(B,),
        in_specs=in_specs,
        out_specs=pl.BlockSpec((T, D), lambda b: (b, 0)),
        out_shape=jax.ShapeDtypeStruct((B * T, D), jnp.float32),
        compiler_params=pltpu.CompilerParams(
            dimension_semantics=("parallel",)),   # v7x: split batches over TCs
        cost_estimate=cost,
    )(*operands)
    return out2d.reshape(B, T, D)


# ----------------------------------------------------------------------------
# Parameters + pure-JAX reference (full-precision, for the correctness check).
# ----------------------------------------------------------------------------
def init_params(key):
    D = D_MODEL
    ks = jax.random.split(key, 8)

    def w(k, shape, s=0.1):
        return jax.random.normal(k, shape, jnp.float32) * s

    return dict(
        wq=w(ks[0], (D, D)), bq=w(ks[1], (1, D), 0.02),
        wk=w(ks[2], (D, D)), bk=w(ks[3], (1, D), 0.02),
        wv=w(ks[4], (D, D)), bv=w(ks[5], (1, D), 0.02),
        wo=w(ks[6], (D, D)), bo=w(ks[7], (1, D), 0.02),
    )


def mha_reference(query, key, value, params, mask=None):
    B, Tq, D = query.shape
    Tk = key.shape[1]
    H, DH = HEADS, D // HEADS
    hp = jax.lax.Precision.HIGHEST

    def lin(x, w, b):
        return jnp.dot(x, w, precision=hp) + b

    q = lin(query.reshape(-1, D), params["wq"], params["bq"]).reshape(B, Tq, H, DH)
    k = lin(key.reshape(-1, D), params["wk"], params["bk"]).reshape(B, Tk, H, DH)
    v = lin(value.reshape(-1, D), params["wv"], params["bv"]).reshape(B, Tk, H, DH)
    q = q.transpose(0, 2, 1, 3)
    k = k.transpose(0, 2, 1, 3)
    v = v.transpose(0, 2, 1, 3)
    s = jnp.einsum('bhqd,bhkd->bhqk', q, k, precision=hp) / jnp.sqrt(jnp.float32(DH))
    if mask is not None:
        s = s + mask
    p = jax.nn.softmax(s, axis=-1)
    ctx = jnp.einsum('bhqk,bhkd->bhqd', p, v, precision=hp)
    ctx = ctx.transpose(0, 2, 1, 3).reshape(B * Tq, D)
    return lin(ctx, params["wo"], params["bo"]).reshape(B, Tq, D)


if __name__ == "__main__":
    root = jax.random.PRNGKey(0)
    kq, kk, kv, kp = jax.random.split(root, 4)

    B, T, D = BATCH, SEQ, D_MODEL
    query = jax.random.normal(kq, (B, T, D), jnp.float32)
    key_in = jax.random.normal(kk, (B, T, D), jnp.float32)
    value = jax.random.normal(kv, (B, T, D), jnp.float32)
    params = init_params(kp)
    # causal additive mask (broadcast over batch*heads), as in decoder usage
    mask = jnp.triu(jnp.full((T, T), -1e9, jnp.float32), k=1)

    mha = jax.jit(multi_head_attention)

    # masked path
    out = jax.block_until_ready(mha(query, key_in, value, params, mask))
    ref = mha_reference(query, key_in, value, params, mask)
    assert out.shape == (B, T, D)
    assert bool(jnp.all(jnp.isfinite(out)))
    assert bool(jnp.allclose(out, ref, atol=1e-3, rtol=1e-3))

    # mask=None path is trace-time specialized (no zero-mask DMA, no mask add)
    out_nm = jax.block_until_ready(mha(query, key_in, value, params, None))
    ref_nm = mha_reference(query, key_in, value, params, None)
    assert bool(jnp.allclose(out_nm, ref_nm, atol=1e-3, rtol=1e-3))

    print("KERNEL_OK")
</pallas_src>

<mosaic_0001>
module attributes {stable_mosaic.version = 11 : i64} {
  func.func @kernel(%arg0: i32, %arg1: memref<8x96xf32, #tpu.memory_space<vmem>>, %arg2: memref<128x96xf32, #tpu.memory_space<vmem>>, %arg3: memref<1x128xf32, #tpu.memory_space<vmem>>, %arg4: memref<8x8xf32, #tpu.memory_space<vmem>>, %arg5: memref<8x32xf32, #tpu.memory_space<vmem>>) attributes {dimension_semantics = [#tpu.dimension_semantics<parallel>], iteration_bounds = array<i64: 2>, scalar_prefetch = 0 : i64, scratch_operands = 0 : i64, tpu.core_type = #tpu.core_type<tc>, window_params = [{transform_indices = @transform_0, window_bounds = array<i64: 8, 96>}, {pipeline_mode = #tpu.pipeline_mode<synchronous>, transform_indices = @transform_1, window_bounds = array<i64: 128, 96>}, {pipeline_mode = #tpu.pipeline_mode<synchronous>, transform_indices = @transform_2, window_bounds = array<i64: 1, 128>}, {pipeline_mode = #tpu.pipeline_mode<synchronous>, transform_indices = @transform_3, window_bounds = array<i64: 8, 8>}, {transform_indices = @transform_4, window_bounds = array<i64: 8, 32>}]} {
    %c0 = arith.constant 0 : index
    %c0_0 = arith.constant 0 : index
    %0 = vector.load %arg1[%c0, %c0_0] : memref<8x96xf32, #tpu.memory_space<vmem>>, vector<8x96xf32>
    %c0_1 = arith.constant 0 : index
    %c0_2 = arith.constant 0 : index
    %1 = vector.load %arg2[%c0_1, %c0_2] : memref<128x96xf32, #tpu.memory_space<vmem>>, vector<96x96xf32>
    %cst = arith.constant dense<0.000000e+00> : vector<8x96xf32>
    %2 = tpu.matmul %0, %1, %cst {dimension_numbers = #tpu.dot_dimension_numbers<[1], [0], [0], [1], [0, 0, 1, 1], [], []>} : vector<8x96xf32>, vector<96x96xf32>, vector<8x96xf32> -> vector<8x96xf32>
    %c0_3 = arith.constant 0 : index
    %c0_4 = arith.constant 0 : index
    %3 = vector.load %arg3[%c0_3, %c0_4] : memref<1x128xf32, #tpu.memory_space<vmem>>, vector<1x96xf32>
    %4 = vector.broadcast %3 : vector<1x96xf32> to vector<8x96xf32>
    %5 = arith.addf %2, %4 : vector<8x96xf32>
    %6 = vector.extract_strided_slice %5 {offsets = [0, 0], sizes = [8, 8], strides = [1, 1]} : vector<8x96xf32> to vector<8x8xf32>
    %7 = vector.extract_strided_slice %5 {offsets = [0, 32], sizes = [8, 8], strides = [1, 1]} : vector<8x96xf32> to vector<8x8xf32>
    %8 = vector.extract_strided_slice %5 {offsets = [0, 64], sizes = [8, 8], strides = [1, 1]} : vector<8x96xf32> to vector<8x8xf32>
    %cst_5 = arith.constant dense<0.000000e+00> : vector<8x8xf32>
    %9 = tpu.matmul %6, %7, %cst_5 {dimension_numbers = #tpu.dot_dimension_numbers<[1], [1], [0], [0], [0, 0, 1, 0], [], []>} : vector<8x8xf32>, vector<8x8xf32>, vector<8x8xf32> -> vector<8x8xf32>
    %c0_6 = arith.constant 0 : index
    %c0_7 = arith.constant 0 : index
    %10 = vector.load %arg4[%c0_6, %c0_7] : memref<8x8xf32, #tpu.memory_space<vmem>>, vector<8x8xf32>
    %11 = arith.addf %9, %10 : vector<8x8xf32>
    %cst_8 = arith.constant dense<0xFF800000> : vector<8xf32>
    %12 = vector.multi_reduction <maximumf>, %11, %cst_8 [1] : vector<8x8xf32> to vector<8xf32>
    %13 = vector.shape_cast %12 : vector<8xf32> to vector<8x1xf32>
    %14 = vector.broadcast %13 : vector<8x1xf32> to vector<8x8xf32>
    %15 = arith.subf %11, %14 : vector<8x8xf32>
    %16 = math.exp %15 : vector<8x8xf32>
    %cst_9 = arith.constant dense<0.000000e+00> : vector<8xf32>
    %17 = vector.multi_reduction <add>, %16, %cst_9 [1] : vector<8x8xf32> to vector<8xf32>
    %18 = vector.shape_cast %17 : vector<8xf32> to vector<8x1xf32>
    %19 = tpu.reciprocal %18 : vector<8x1xf32> -> vector<8x1xf32>
    %20 = vector.broadcast %19 : vector<8x1xf32> to vector<8x8xf32>
    %21 = arith.mulf %16, %20 : vector<8x8xf32>
    %cst_10 = arith.constant dense<0.000000e+00> : vector<8x8xf32>
    %22 = tpu.matmul %21, %8, %cst_10 {dimension_numbers = #tpu.dot_dimension_numbers<[1], [0], [0], [1], [0, 0, 1, 1], [], []>} : vector<8x8xf32>, vector<8x8xf32>, vector<8x8xf32> -> vector<8x8xf32>
    %23 = vector.extract_strided_slice %5 {offsets = [0, 8], sizes = [8, 8], strides = [1, 1]} : vector<8x96xf32> to vector<8x8xf32>
    %24 = vector.extract_strided_slice %5 {offsets = [0, 40], sizes = [8, 8], strides = [1, 1]} : vector<8x96xf32> to vector<8x8xf32>
    %25 = vector.extract_strided_slice %5 {offsets = [0, 72], sizes = [8, 8], strides = [1, 1]} : vector<8x96xf32> to vector<8x8xf32>
    %cst_11 = arith.constant dense<0.000000e+00> : vector<8x8xf32>
    %26 = tpu.matmul %23, %24, %cst_11 {dimension_numbers = #tpu.dot_dimension_numbers<[1], [1], [0], [0], [0, 0, 1, 0], [], []>} : vector<8x8xf32>, vector<8x8xf32>, vector<8x8xf32> -> vector<8x8xf32>
    %c0_12 = arith.constant 0 : index
    %c0_13 = arith.constant 0 : index
    %27 = vector.load %arg4[%c0_12, %c0_13] : memref<8x8xf32, #tpu.memory_space<vmem>>, vector<8x8xf32>
    %28 = arith.addf %26, %27 : vector<8x8xf32>
    %cst_14 = arith.constant dense<0xFF800000> : vector<8xf32>
    %29 = vector.multi_reduction <maximumf>, %28, %cst_14 [1] : vector<8x8xf32> to vector<8xf32>
    %30 = vector.shape_cast %29 : vector<8xf32> to vector<8x1xf32>
    %31 = vector.broadcast %30 : vector<8x1xf32> to vector<8x8xf32>
    %32 = arith.subf %28, %31 : vector<8x8xf32>
    %33 = math.exp %32 : vector<8x8xf32>
    %cst_15 = arith.constant dense<0.000000e+00> : vector<8xf32>
    %34 = vector.multi_reduction <add>, %33, %cst_15 [1] : vector<8x8xf32> to vector<8xf32>
    %35 = vector.shape_cast %34 : vector<8xf32> to vector<8x1xf32>
    %36 = tpu.reciprocal %35 : vector<8x1xf32> -> vector<8x1xf32>
    %37 = vector.broadcast %36 : vector<8x1xf32> to vector<8x8xf32>
    %38 = arith.mulf %33, %37 : vector<8x8xf32>
    %cst_16 = arith.constant dense<0.000000e+00> : vector<8x8xf32>
    %39 = tpu.matmul %38, %25, %cst_16 {dimension_numbers = #tpu.dot_dimension_numbers<[1], [0], [0], [1], [0, 0, 1, 1], [], []>} : vector<8x8xf32>, vector<8x8xf32>, vector<8x8xf32> -> vector<8x8xf32>
    %40 = vector.extract_strided_slice %5 {offsets = [0, 16], sizes = [8, 8], strides = [1, 1]} : vector<8x96xf32> to vector<8x8xf32>
    %41 = vector.extract_strided_slice %5 {offsets = [0, 48], sizes = [8, 8], strides = [1, 1]} : vector<8x96xf32> to vector<8x8xf32>
    %42 = vector.extract_strided_slice %5 {offsets = [0, 80], sizes = [8, 8], strides = [1, 1]} : vector<8x96xf32> to vector<8x8xf32>
    %cst_17 = arith.constant dense<0.000000e+00> : vector<8x8xf32>
    %43 = tpu.matmul %40, %41, %cst_17 {dimension_numbers = #tpu.dot_dimension_numbers<[1], [1], [0], [0], [0, 0, 1, 0], [], []>} : vector<8x8xf32>, vector<8x8xf32>, vector<8x8xf32> -> vector<8x8xf32>
    %c0_18 = arith.constant 0 : index
    %c0_19 = arith.constant 0 : index
    %44 = vector.load %arg4[%c0_18, %c0_19] : memref<8x8xf32, #tpu.memory_space<vmem>>, vector<8x8xf32>
    %45 = arith.addf %43, %44 : vector<8x8xf32>
    %cst_20 = arith.constant dense<0xFF800000> : vector<8xf32>
    %46 = vector.multi_reduction <maximumf>, %45, %cst_20 [1] : vector<8x8xf32> to vector<8xf32>
    %47 = vector.shape_cast %46 : vector<8xf32> to vector<8x1xf32>
    %48 = vector.broadcast %47 : vector<8x1xf32> to vector<8x8xf32>
    %49 = arith.subf %45, %48 : vector<8x8xf32>
    %50 = math.exp %49 : vector<8x8xf32>
    %cst_21 = arith.constant dense<0.000000e+00> : vector<8xf32>
    %51 = vector.multi_reduction <add>, %50, %cst_21 [1] : vector<8x8xf32> to vector<8xf32>
    %52 = vector.shape_cast %51 : vector<8xf32> to vector<8x1xf32>
    %53 = tpu.reciprocal %52 : vector<8x1xf32> -> vector<8x1xf32>
    %54 = vector.broadcast %53 : vector<8x1xf32> to vector<8x8xf32>
    %55 = arith.mulf %50, %54 : vector<8x8xf32>
    %cst_22 = arith.constant dense<0.000000e+00> : vector<8x8xf32>
    %56 = tpu.matmul %55, %42, %cst_22 {dimension_numbers = #tpu.dot_dimension_numbers<[1], [0], [0], [1], [0, 0, 1, 1], [], []>} : vector<8x8xf32>, vector<8x8xf32>, vector<8x8xf32> -> vector<8x8xf32>
    %57 = vector.extract_strided_slice %5 {offsets = [0, 24], sizes = [8, 8], strides = [1, 1]} : vector<8x96xf32> to vector<8x8xf32>
    %58 = vector.extract_strided_slice %5 {offsets = [0, 56], sizes = [8, 8], strides = [1, 1]} : vector<8x96xf32> to vector<8x8xf32>
    %59 = vector.extract_strided_slice %5 {offsets = [0, 88], sizes = [8, 8], strides = [1, 1]} : vector<8x96xf32> to vector<8x8xf32>
    %cst_23 = arith.constant dense<0.000000e+00> : vector<8x8xf32>
    %60 = tpu.matmul %57, %58, %cst_23 {dimension_numbers = #tpu.dot_dimension_numbers<[1], [1], [0], [0], [0, 0, 1, 0], [], []>} : vector<8x8xf32>, vector<8x8xf32>, vector<8x8xf32> -> vector<8x8xf32>
    %c0_24 = arith.constant 0 : index
    %c0_25 = arith.constant 0 : index
    %61 = vector.load %arg4[%c0_24, %c0_25] : memref<8x8xf32, #tpu.memory_space<vmem>>, vector<8x8xf32>
    %62 = arith.addf %60, %61 : vector<8x8xf32>
    %cst_26 = arith.constant dense<0xFF800000> : vector<8xf32>
    %63 = vector.multi_reduction <maximumf>, %62, %cst_26 [1] : vector<8x8xf32> to vector<8xf32>
    %64 = vector.shape_cast %63 : vector<8xf32> to vector<8x1xf32>
    %65 = vector.broadcast %64 : vector<8x1xf32> to vector<8x8xf32>
    %66 = arith.subf %62, %65 : vector<8x8xf32>
    %67 = math.exp %66 : vector<8x8xf32>
    %cst_27 = arith.constant dense<0.000000e+00> : vector<8xf32>
    %68 = vector.multi_reduction <add>, %67, %cst_27 [1] : vector<8x8xf32> to vector<8xf32>
    %69 = vector.shape_cast %68 : vector<8xf32> to vector<8x1xf32>
    %70 = tpu.reciprocal %69 : vector<8x1xf32> -> vector<8x1xf32>
    %71 = vector.broadcast %70 : vector<8x1xf32> to vector<8x8xf32>
    %72 = arith.mulf %67, %71 : vector<8x8xf32>
    %cst_28 = arith.constant dense<0.000000e+00> : vector<8x8xf32>
    %73 = tpu.matmul %72, %59, %cst_28 {dimension_numbers = #tpu.dot_dimension_numbers<[1], [0], [0], [1], [0, 0, 1, 1], [], []>} : vector<8x8xf32>, vector<8x8xf32>, vector<8x8xf32> -> vector<8x8xf32>
    %74 = tpu.concatenate %22, %39, %56, %73 in 1 : vector<8x8xf32>, vector<8x8xf32>, vector<8x8xf32>, vector<8x8xf32> -> vector<8x32xf32>
    %c96 = arith.constant 96 : index
    %c0_29 = arith.constant 0 : index
    %75 = vector.load %arg2[%c96, %c0_29] : memref<128x96xf32, #tpu.memory_space<vmem>>, vector<32x32xf32>
    %cst_30 = arith.constant dense<0.000000e+00> : vector<8x32xf32>
    %76 = tpu.matmul %74, %75, %cst_30 {dimension_numbers = #tpu.dot_dimension_numbers<[1], [0], [0], [1], [0, 0, 1, 1], [], []>} : vector<8x32xf32>, vector<32x32xf32>, vector<8x32xf32> -> vector<8x32xf32>
    %c0_31 = arith.constant 0 : index
    %c96_32 = arith.constant 96 : index
    %77 = vector.load %arg3[%c0_31, %c96_32] : memref<1x128xf32, #tpu.memory_space<vmem>>, vector<1x32xf32>
    %78 = vector.broadcast %77 : vector<1x32xf32> to vector<8x32xf32>
    %79 = arith.addf %76, %78 : vector<8x32xf32>
    %c0_33 = arith.constant 0 : index
    %c0_34 = arith.constant 0 : index
    %80 = vector.load %arg5[%c0_33, %c0_34] : memref<8x32xf32, #tpu.memory_space<vmem>>, vector<8x32xf32>
    tpu.vector_store %arg5[%c0_33, %c0_34], %79 {strides = array<i32>} : memref<8x32xf32, #tpu.memory_space<vmem>>, vector<8x32xf32>,
    return
  }
  func.func @transform_0(%arg0: i32) -> (i32, i32) {
    %c0_i32 = arith.constant 0 : i32
    %c0_i32_0 = arith.constant 0 : i32
    return %arg0, %c0_i32 : i32, i32
  }
  func.func @transform_1(%arg0: i32) -> (i32, i32) {
    %c0_i32 = arith.constant 0 : i32
    %c0_i32_0 = arith.constant 0 : i32
    %c0_i32_1 = arith.constant 0 : i32
    return %c0_i32, %c0_i32_0 : i32, i32
  }
  func.func @transform_2(%arg0: i32) -> (i32, i32) {
    %c0_i32 = arith.constant 0 : i32
    %c0_i32_0 = arith.constant 0 : i32
    %c0_i32_1 = arith.constant 0 : i32
    return %c0_i32, %c0_i32_0 : i32, i32
  }
  func.func @transform_3(%arg0: i32) -> (i32, i32) {
    %c0_i32 = arith.constant 0 : i32
    %c0_i32_0 = arith.constant 0 : i32
    %c0_i32_1 = arith.constant 0 : i32
    return %c0_i32, %c0_i32_0 : i32, i32
  }
  func.func @transform_4(%arg0: i32) -> (i32, i32) {
    %c0_i32 = arith.constant 0 : i32
    %c0_i32_0 = arith.constant 0 : i32
    return %arg0, %c0_i32 : i32, i32
  }
}

</mosaic_0001>

<llo_original>
// kernel: multi_head_attention.1
$region0: #{multi_head_attention.1}
  #allocation0 [shape = 'u32[]', space=smem, size = 0x4, offset = 0x4, fixed_abs, tag = 'smem constant byte address 0x4 - core index']
  #allocation1 [shape = 'u32[144,128]{1,0:T(1,128)}', space=vmem, size = 0x12000, scoped, tag = 'internal scratch']
  %s0 = inlined_call_operand.vmem [shape: f32[16,96], index: 0, kind: input, shape index: {}]
  %s1 = inlined_call_operand.vmem [shape: f32[128,96], index: 1, kind: input, shape index: {}]
  %s2 = inlined_call_operand.vmem [shape: f32[1,128], index: 2, kind: input, shape index: {}]
  %s3 = inlined_call_operand.vmem [shape: f32[8,8], index: 3, kind: input, shape index: {}]
  %s4 = inlined_call_operand.hbm [shape: f32[16,32], index: 4, kind: output, shape index: {}]
  %s5 = sld [smem:[#allocation0]]
  $region49: #{multi_head_attention.1} parent=0
    _
  %s7 = ssub.s32 1, %s5
  %s8 = scalar_select 0, %s7, %s5
  $region1: #{multi_head_attention.1} parent=0
    #allocation2 [shape = 'u8[8192]{0}', space=vmem, size = 0x2000, scoped, tag = 'output window, operand 0']
    #allocation3 [shape = 's32[2]{0}', space=sflag, size = 0x8, scoped, tag = 'scoped memory for multi_head_attention.1']
    %9 = vsyncpa [#allocation3], 0
    %s10 = scalar_lea.sflag [#allocation3], 1
    %11 = vsyncpa %s10, 0
    loop: start=0, step=1, limit=4
    $region2: #{multi_head_attention.1} parent=1 // loop_pre_header
      _
    $region3: #{multi_head_attention.1} parent=1 // loop_header
      %s13 = sphi 0, %s17
      %p14 = scmp.ge.s32.totalorder %s13, 4
      %s23 = sphi 0, %s25
      %s26 = sphi 0, %s23
      %s27 = sphi 0, %s26
      %s43 = sphi 0, %s27
      %s47 = sphi 0, %s47
      %s49 = sphi 0, %s47
      %s50 = sphi 0, %s49
      %s64 = sphi 0, %s50
      %s68 = sphi 0, %s68
      %s70 = sphi 0, %s68
      %s71 = sphi 0, %s70
      %s85 = sphi 0, %s71
      %s89 = sphi 0, %s89
      %s91 = sphi 0, %s89
      %s92 = sphi 0, %s91
      %s106 = sphi 0, %s92
      %s112 = sphi 0, %s114
      %s115 = sphi 0, %s112
      %s116 = sphi 0, %s115
      %s132 = sphi 0, %s116
    $region4: #{multi_head_attention.1} parent=1 // loop_header_branch
      %16 = sbr.rel (%p14) target = $region8
    $region5: #{multi_head_attention.1} parent=1 // loop_body
      %s18 = ssub.s32 %s13, 1
      %s19 = ssub.s32 %s13, 2
      %s20 = sadd.s32 %s13, 1
      %s21 = ssub.s32 %s13, %s20
      %p22 = scmp.eq.s32.totalorder %s21, 0
      %s24 = sadd.s32 %s23, 1
      %s25 = scalar_select %p22, %s23, %s24
      %p28 = pneg %p22
      %p29 = scmp.eq.s32.totalorder %s13, 1
      %p30 = por %p28, %p29
      %p31 = scmp.ne.s32.totalorder %s23, %s26
      %p32 = scmp.eq.s32.totalorder %s13, 0
      %p33 = por %p31, %p32
      %p34 = scmp.ne.s32.totalorder %s23, %s26
      %p35 = scmp.eq.s32.totalorder %s18, 1
      %p36 = por %p34, %p35
      %p37 = scmp.ne.s32.totalorder %s26, %s27
      %p38 = scmp.eq.s32.totalorder %s18, 0
      %p39 = por %p37, %p38
      %p40 = scmp.ne.s32.totalorder %s26, %s27
      %p41 = scmp.eq.s32.totalorder %s19, 1
      %p42 = por %p40, %p41
      %p44 = scmp.ne.s32.totalorder %s27, %s43
      %p45 = scmp.eq.s32.totalorder %s19, 0
      %p46 = por %p44, %p45
      %s48 = sadd.s32 %s47, 1
      %p51 = scmp.eq.s32.totalorder %s13, 1
      %p52 = scmp.ne.s32.totalorder %s47, %s49
      %p53 = scmp.eq.s32.totalorder %s13, 0
      %p54 = por %p52, %p53
      %p55 = scmp.ne.s32.totalorder %s47, %s49
      %p56 = scmp.eq.s32.totalorder %s18, 1
      %p57 = por %p55, %p56
      %p58 = scmp.ne.s32.totalorder %s49, %s50
      %p59 = scmp.eq.s32.totalorder %s18, 0
      %p60 = por %p58, %p59
      %p61 = scmp.ne.s32.totalorder %s49, %s50
      %p62 = scmp.eq.s32.totalorder %s19, 1
      %p63 = por %p61, %p62
      %p65 = scmp.ne.s32.totalorder %s50, %s64
      %p66 = scmp.eq.s32.totalorder %s19, 0
      %p67 = por %p65, %p66
      %s69 = sadd.s32 %s68, 1
      %p72 = scmp.eq.s32.totalorder %s13, 1
      %p73 = scmp.ne.s32.totalorder %s68, %s70
      %p74 = scmp.eq.s32.totalorder %s13, 0
      %p75 = por %p73, %p74
      %p76 = scmp.ne.s32.totalorder %s68, %s70
      %p77 = scmp.eq.s32.totalorder %s18, 1
      %p78 = por %p76, %p77
      %p79 = scmp.ne.s32.totalorder %s70, %s71
      %p80 = scmp.eq.s32.totalorder %s18, 0
      %p81 = por %p79, %p80
      %p82 = scmp.ne.s32.totalorder %s70, %s71
      %p83 = scmp.eq.s32.totalorder %s19, 1
      %p84 = por %p82, %p83
      %p86 = scmp.ne.s32.totalorder %s71, %s85
      %p87 = scmp.eq.s32.totalorder %s19, 0
      %p88 = por %p86, %p87
      %s90 = sadd.s32 %s89, 1
      %p93 = scmp.eq.s32.totalorder %s13, 1
      %p94 = scmp.ne.s32.totalorder %s89, %s91
      %p95 = scmp.eq.s32.totalorder %s13, 0
      %p96 = por %p94, %p95
      %p97 = scmp.ne.s32.totalorder %s89, %s91
      %p98 = scmp.eq.s32.totalorder %s18, 1
      %p99 = por %p97, %p98
      %p100 = scmp.ne.s32.totalorder %s91, %s92
      %p101 = scmp.eq.s32.totalorder %s18, 0
      %p102 = por %p100, %p101
      %p103 = scmp.ne.s32.totalorder %s91, %s92
      %p104 = scmp.eq.s32.totalorder %s19, 1
      %p105 = por %p103, %p104
      %p107 = scmp.ne.s32.totalorder %s92, %s106
      %p108 = scmp.eq.s32.totalorder %s19, 0
      %p109 = por %p107, %p108
      %s110 = ssub.s32 %s13, %s20
      %p111 = scmp.eq.s32.totalorder %s110, 0
      %s113 = sadd.s32 %s112, 1
      %s114 = scalar_select %p111, %s112, %s113
      %p117 = pneg %p111
      %p118 = scmp.eq.s32.totalorder %s13, 1
      %p119 = por %p117, %p118
      %p120 = scmp.ne.s32.totalorder %s112, %s115
      %p121 = scmp.eq.s32.totalorder %s13, 0
      %p122 = por %p120, %p121
      %p123 = scmp.ne.s32.totalorder %s112, %s115
      %p124 = scmp.eq.s32.totalorder %s18, 1
      %p125 = por %p123, %p124
      %p126 = scmp.ne.s32.totalorder %s115, %s116
      %p127 = scmp.eq.s32.totalorder %s18, 0
      %p128 = por %p126, %p127
      %p129 = scmp.ne.s32.totalorder %s115, %s116
      %p130 = scmp.eq.s32.totalorder %s19, 1
      %p131 = por %p129, %p130
      %p133 = scmp.ne.s32.totalorder %s116, %s132
      %p134 = scmp.eq.s32.totalorder %s19, 0
      %p135 = por %p133, %p134
      %p136 = scmp.le.s32.totalorder 1, %s13
      %p137 = scmp.lt.s32.totalorder %s13, 3
      %p138 = pnand %p136, %p137
      %p139 = pneg %p138
      // Predicated region
      $region9: #{multi_head_attention.1} parent=5 // pred_check
        _
      $region10: #{multi_head_attention.1} parent=5 // pred_check_branch
        %141 = sbr.rel (%p138) target = $region12
      $region11: #{multi_head_attention.1} parent=5 // pred_region
        %s142 = ssub.s32 %s13, 1
        // Predicated region
        $region13: #{multi_head_attention.1} parent=11 // pred_check
          %p143 = pneg %p60
        $region14: #{multi_head_attention.1} parent=11 // pred_check_branch
          %145 = sbr.rel (%p143) target = $region16
        $region15: #{multi_head_attention.1} parent=11 // pred_region
          _
        $region16: #{multi_head_attention.1} parent=11 // pred_fallthru
          _
        // Predicated region
        $region17: #{multi_head_attention.1} parent=11 // pred_check
          %p146 = pneg %p81
        $region18: #{multi_head_attention.1} parent=11 // pred_check_branch
          %148 = sbr.rel (%p146) target = $region20
        $region19: #{multi_head_attention.1} parent=11 // pred_region
          _
        $region20: #{multi_head_attention.1} parent=11 // pred_fallthru
          _
        // Predicated region
        $region21: #{multi_head_attention.1} parent=11 // pred_check
          %p149 = pneg %p102
        $region22: #{multi_head_attention.1} parent=11 // pred_check_branch
          %151 = sbr.rel (%p149) target = $region24
        $region23: #{multi_head_attention.1} parent=11 // pred_region
          _
        $region24: #{multi_head_attention.1} parent=11 // pred_fallthru
          _
      $region12: #{multi_head_attention.1} parent=5 // pred_fallthru
        _
      %p152 = scmp.lt.s32.totalorder %s13, 2
      // Predicated region
      $region25: #{multi_head_attention.1} parent=5 // pred_check
        %p153 = pneg %p152
      $region26: #{multi_head_attention.1} parent=5 // pred_check_branch
        %155 = sbr.rel (%p153) target = $region28
      $region27: #{multi_head_attention.1} parent=5 // pred_region
        // Predicated region
        $region29: #{multi_head_attention.1} parent=27 // pred_check
          %p156 = pneg %p33
        $region30: #{multi_head_attention.1} parent=27 // pred_check_branch
          %158 = sbr.rel (%p156) target = $region32
        $region31: #{multi_head_attention.1} parent=27 // pred_region
          %p159 = scmp.lt.s32.totalorder %s13, 1
          %s160 = scalar_select %p159, %s13, 1
          %s161 = smul.addr %s160, 8
          %s162 = scalar_lea.vmem %s0, %s161
        $region32: #{multi_head_attention.1} parent=27 // pred_fallthru
          _
      $region28: #{multi_head_attention.1} parent=5 // pred_fallthru
        _
      %p163 = scmp.le.s32.totalorder 1, %s13
      %p164 = scmp.lt.s32.totalorder %s13, 3
      %p165 = pnand %p163, %p164
      %p166 = pneg %p165
      // Predicated region
      $region33: #{multi_head_attention.1} parent=5 // pred_check
        _
      $region34: #{multi_head_attention.1} parent=5 // pred_check_branch
        %168 = sbr.rel (%p165) target = $region36
      $region35: #{multi_head_attention.1} parent=5 // pred_region
        %s169 = ssub.s32 %s13, 1
        %p170 = scmp.lt.s32.totalorder %s18, 1
        %s171 = scalar_select %p170, %s18, 1
        %s172 = smul.addr %s171, 8
        %s173 = scalar_lea.vmem %s0, %s172
        %p174 = pneg %p39
        %p175 = pneg %p36
        %p176 = pneg %p60
        %p177 = pneg %p57
        %p178 = pneg %p81
        %p179 = pneg %p78
        %p180 = pneg %p102
        %p181 = pneg %p99
        %p182 = pneg %p128
        %p183 = pneg %p125
        %s184 = sand.u32 %s115, 1
        %s185 = scalar_lea.sflag [#allocation3], %s184
        %s186 = sand.u32 %s115, 1
        %s187 = smul.addr %s186, 8
        %s188 = scalar_lea.vmem [#allocation2], %s187
        %p189 = scmp.lt.s32.totalorder %s18, 1
        %s190 = scalar_select %p189, %s18, 1
        %s191 = smul.addr %s190, 8
        %s192 = scalar_lea.vmem %s0, %s191
        %v193 = vld [vmem:[%s192] sm:$0xff]
        %v194 = vld [vmem:[%s1] sm:$0xff]
        %v195 = vld [vmem:[%s1 + $0x8] sm:$0xff]
        %v196 = vld [vmem:[%s1 + $0x10] sm:$0xff]
        %v197 = vld [vmem:[%s1 + $0x18] sm:$0xff]
        %v198 = vld [vmem:[%s1 + $0x20] sm:$0xff]
        %v199 = vld [vmem:[%s1 + $0x28] sm:$0xff]
        %v200 = vld [vmem:[%s1 + $0x30] sm:$0xff]
        %v201 = vld [vmem:[%s1 + $0x38] sm:$0xff]
        %v202 = vld [vmem:[%s1 + $0x40] sm:$0xff]
        %v203 = vld [vmem:[%s1 + $0x48] sm:$0xff]
        %v204 = vld [vmem:[%s1 + $0x50] sm:$0xff]
        %v205 = vld [vmem:[%s1 + $0x58] sm:$0xff]
        %v206 = vld [vmem:[%s2] sm:$0x1]
        %v208 = vlaneseq
        %v209 = vshrl.u32 %v208, 7
        %v210 = vsub.s32 0, %v209
        %v211 = vrot.slane %v206, %v210
        %vm213 = vcmask 785408
        %v215 = vsel %vm213, %v193, 0
        %217 = vmatprep.subr.mxu0 0.0
        %218 = vmatpush1.msra.mxu0 %v194
        %219 = vmatprep.subr.mxu0 0.0
        %220 = vmatpush1.msra.mxu0 %v195
        %221 = vmatprep.subr.mxu0 0.0
        %222 = vmatpush1.msra.mxu0 %v196
        %223 = vmatprep.subr.mxu0 0.0
        %224 = vmatpush1.msra.mxu0 %v197
        %225 = vmatprep.subr.mxu0 0.0
        %226 = vmatpush1.msra.mxu0 %v198
        %227 = vmatprep.subr.mxu0 0.0
        %228 = vmatpush1.msra.mxu0 %v199
        %229 = vmatprep.subr.mxu0 0.0
        %230 = vmatpush1.msra.mxu0 %v200
        %231 = vmatprep.subr.mxu0 0.0
        %232 = vmatpush1.msra.mxu0 %v201
        %233 = vmatprep.subr.mxu0 0.0
        %234 = vmatpush1.msra.mxu0 %v202
        %235 = vmatprep.subr.mxu0 0.0
        %236 = vmatpush1.msra.mxu0 %v203
        %237 = vmatprep.subr.mxu0 0.0
        %238 = vmatpush1.msra.mxu0 %v204
        %239 = vmatprep.subr.mxu0 0.0
        %240 = vmatpush1.msra.mxu0 %v205
        %241 = vmatprep.subr.mxu0 0.0
        %242 = vmatpush1.msra.mxu0 0.0
        %243 = vmatprep.subr.mxu0 0.0
        %244 = vmatpush1.msra.mxu0 0.0
        %245 = vmatprep.subr.mxu0 0.0
        %246 = vmatpush1.msra.mxu0 0.0
        %247 = vmatprep.subr.mxu0 0.0
        %248 = vmatpush1.msra.mxu0 0.0
        %249 = vmatprep.subr.mxu0 0.0
        %250 = vmatpush1.msra.mxu0 0.0
        %251 = vmatprep.subr.mxu0 0.0
        %252 = vmatpush1.msra.mxu0 0.0
        %253 = vmatprep.subr.mxu0 0.0
        %254 = vmatpush1.msra.mxu0 0.0
        %255 = vmatprep.subr.mxu0 0.0
        %256 = vmatpush1.msra.mxu0 0.0
        %257 = vmatprep.subr.mxu0 0.0
        %258 = vmatpush1.msra.mxu0 0.0
        %259 = vmatprep.subr.mxu0 0.0
        %260 = vmatpush1.msra.mxu0 0.0
        %261 = vmatprep.subr.mxu0 0.0
        %262 = vmatpush1.msra.mxu0 0.0
        %263 = vmatprep.subr.mxu0 0.0
        %264 = vmatpush1.msra.mxu0 0.0
        %265 = vmatprep.subr.mxu0 0.0
        %266 = vmatpush1.msra.mxu0 0.0
        %267 = vmatprep.subr.mxu0 0.0
        %268 = vmatpush1.msra.mxu0 0.0
        %269 = vmatprep.subr.mxu0 0.0
        %270 = vmatpush1.msra.mxu0 0.0
        %271 = vmatprep.subr.mxu0 0.0
        %272 = vmatpush1.msra.mxu0 0.0
        %273 = vmatprep.subr.mxu0 0.0
        %274 = vmatpush1.msra.mxu0 0.0
        %275 = vmatprep.subr.mxu0 0.0
        %276 = vmatpush1.msra.mxu0 0.0
        %277 = vmatprep.subr.mxu0 0.0
        %278 = vmatpush1.msra.mxu0 0.0
        %279 = vmatprep.subr.mxu0 0.0
        %280 = vmatpush1.msra.mxu0 0.0
        %281 = vmatprep.mubr.f32.mxu0 0.0
        %282 = vmatmul.mubr.f32.gmra.mrb[0].mxu0 %v215
        %v283 = vpop.f32.mrb[0].mxu0
        %v284 = vadd.f32 %v211, %v283
        %v285 = vpop.f32.mrb[0].mxu0
        %286 = vdwg.mxu0
        %v287 = vld [vmem:[%s3] sm:$0xff]
        %289 = vrot.lane.b32.xlu0 %v284, 96
        %v290 = vpop.permute.xlu0 %289
        %vm291 = vcmask 64512
        %v292 = vsel %vm291, %v284, 0
        %v294 = vsel %vm291, %v290, 0
        %296 = vmatprep.subr.mxu0 0.0
        %297 = vmatpush1.xpose.msra.mxu0 %v294
        %298 = vmatprep.subr.mxu0 0.0
        %299 = vmatpush1.xpose.msra.mxu0 0.0
        %300 = vmatprep.subr.mxu0 0.0
        %301 = vmatpush1.xpose.msra.mxu0 0.0
        %302 = vmatprep.subr.mxu0 0.0
        %303 = vmatpush1.xpose.msra.mxu0 0.0
        %304 = vmatprep.subr.mxu0 0.0
        %305 = vmatpush1.xpose.msra.mxu0 0.0
        %306 = vmatprep.subr.mxu0 0.0
        %307 = vmatpush1.xpose.msra.mxu0 0.0
        %308 = vmatprep.subr.mxu0 0.0
        %309 = vmatpush1.xpose.msra.mxu0 0.0
        %310 = vmatprep.subr.mxu0 0.0
        %311 = vmatpush1.xpose.msra.mxu0 0.0
        %312 = vmatprep.subr.mxu0 0.0
        %313 = vmatpush1.xpose.msra.mxu0 0.0
        %314 = vmatprep.subr.mxu0 0.0
        %315 = vmatpush1.xpose.msra.mxu0 0.0
        %316 = vmatprep.subr.mxu0 0.0
        %317 = vmatpush1.xpose.msra.mxu0 0.0
        %318 = vmatprep.subr.mxu0 0.0
        %319 = vmatpush1.xpose.msra.mxu0 0.0
        %320 = vmatprep.subr.mxu0 0.0
        %321 = vmatpush1.xpose.msra.mxu0 0.0
        %322 = vmatprep.subr.mxu0 0.0
        %323 = vmatpush1.xpose.msra.mxu0 0.0
        %324 = vmatprep.subr.mxu0 0.0
        %325 = vmatpush1.xpose.msra.mxu0 0.0
        %326 = vmatprep.subr.mxu0 0.0
        %327 = vmatpush1.xpose.msra.mxu0 0.0
        %328 = vmatprep.subr.mxu0 0.0
        %329 = vmatpush1.xpose.msra.mxu0 0.0
        %330 = vmatprep.subr.mxu0 0.0
        %331 = vmatpush1.xpose.msra.mxu0 0.0
        %332 = vmatprep.subr.mxu0 0.0
        %333 = vmatpush1.xpose.msra.mxu0 0.0
        %334 = vmatprep.subr.mxu0 0.0
        %335 = vmatpush1.xpose.msra.mxu0 0.0
        %336 = vmatprep.subr.mxu0 0.0
        %337 = vmatpush1.xpose.msra.mxu0 0.0
        %338 = vmatprep.subr.mxu0 0.0
        %339 = vmatpush1.xpose.msra.mxu0 0.0
        %340 = vmatprep.subr.mxu0 0.0
        %341 = vmatpush1.xpose.msra.mxu0 0.0
        %342 = vmatprep.subr.mxu0 0.0
        %343 = vmatpush1.xpose.msra.mxu0 0.0
        %344 = vmatprep.subr.mxu0 0.0
        %345 = vmatpush1.xpose.msra.mxu0 0.0
        %346 = vmatprep.subr.mxu0 0.0
        %347 = vmatpush1.xpose.msra.mxu0 0.0
        %348 = vmatprep.subr.mxu0 0.0
        %349 = vmatpush1.xpose.msra.mxu0 0.0
        %350 = vmatprep.subr.mxu0 0.0
        %351 = vmatpush1.xpose.msra.mxu0 0.0
        %352 = vmatprep.subr.mxu0 0.0
        %353 = vmatpush1.xpose.msra.mxu0 0.0
        %354 = vmatprep.subr.mxu0 0.0
        %355 = vmatpush1.xpose.msra.mxu0 0.0
        %356 = vmatprep.subr.mxu0 0.0
        %357 = vmatpush1.xpose.msra.mxu0 0.0
        %358 = vmatprep.subr.mxu0 0.0
        %359 = vmatpush1.xpose.msra.mxu0 0.0
        %360 = vmatprep.mubr.f32.mxu0 0.0
        %361 = vmatmul.mubr.f32.gmra.mrb[0].mxu0 %v292
        %v362 = vpop.f32.mrb[0].mxu0
        %v363 = vadd.f32 %v287, %v362
        %v364 = vpop.f32.mrb[0].mxu0
        %365 = vdwg.mxu0
        %v366 = vsel %vm291, %v363, -inf
        %367 = vmax.xlane.f32.xlu0 %v366
        %v368 = vpop.xlane.xlu0 %367
        %v369 = vsub.f32 %v363, %v368
        %v370 = vmul.f32 %v369, 1.442695
        %v371 = vpow.pop %v370
        %v372 = vsel %vm291, %v371, 0.0
        %373 = vadd.xlane.f32.xlu0 %v372
        %v374 = vpop.xlane.xlu0 %373
        %v375 = vrcp.pop %v374
        %v376 = vmul.f32 %v371, %v375
        %377 = vrot.lane.b32.xlu0 %v284, 64
        %v378 = vpop.permute.xlu0 %377
        %v381 = vsel %vm291, %v376, 0
        %383 = vmatprep.subr.mxu0 0.0
        %384 = vmatpush1.msra.mxu0 %v378
        %385 = vmatprep.subr.mxu0 0.0
        %386 = vmatpush1.msra.mxu0 0.0
        %387 = vmatprep.subr.mxu0 0.0
        %388 = vmatpush1.msra.mxu0 0.0
        %389 = vmatprep.subr.mxu0 0.0
        %390 = vmatpush1.msra.mxu0 0.0
        %391 = vmatprep.subr.mxu0 0.0
        %392 = vmatpush1.msra.mxu0 0.0
        %393 = vmatprep.subr.mxu0 0.0
        %394 = vmatpush1.msra.mxu0 0.0
        %395 = vmatprep.subr.mxu0 0.0
        %396 = vmatpush1.msra.mxu0 0.0
        %397 = vmatprep.subr.mxu0 0.0
        %398 = vmatpush1.msra.mxu0 0.0
        %399 = vmatprep.subr.mxu0 0.0
        %400 = vmatpush1.msra.mxu0 0.0
        %401 = vmatprep.subr.mxu0 0.0
        %402 = vmatpush1.msra.mxu0 0.0
        %403 = vmatprep.subr.mxu0 0.0
        %404 = vmatpush1.msra.mxu0 0.0
        %405 = vmatprep.subr.mxu0 0.0
        %406 = vmatpush1.msra.mxu0 0.0
        %407 = vmatprep.subr.mxu0 0.0
        %408 = vmatpush1.msra.mxu0 0.0
        %409 = vmatprep.subr.mxu0 0.0
        %410 = vmatpush1.msra.mxu0 0.0
        %411 = vmatprep.subr.mxu0 0.0
        %412 = vmatpush1.msra.mxu0 0.0
        %413 = vmatprep.subr.mxu0 0.0
        %414 = vmatpush1.msra.mxu0 0.0
        %415 = vmatprep.subr.mxu0 0.0
        %416 = vmatpush1.msra.mxu0 0.0
        %417 = vmatprep.subr.mxu0 0.0
        %418 = vmatpush1.msra.mxu0 0.0
        %419 = vmatprep.subr.mxu0 0.0
        %420 = vmatpush1.msra.mxu0 0.0
        %421 = vmatprep.subr.mxu0 0.0
        %422 = vmatpush1.msra.mxu0 0.0
        %423 = vmatprep.subr.mxu0 0.0
        %424 = vmatpush1.msra.mxu0 0.0
        %425 = vmatprep.subr.mxu0 0.0
        %426 = vmatpush1.msra.mxu0 0.0
        %427 = vmatprep.subr.mxu0 0.0
        %428 = vmatpush1.msra.mxu0 0.0
        %429 = vmatprep.subr.mxu0 0.0
        %430 = vmatpush1.msra.mxu0 0.0
        %431 = vmatprep.subr.mxu0 0.0
        %432 = vmatpush1.msra.mxu0 0.0
        %433 = vmatprep.subr.mxu0 0.0
        %434 = vmatpush1.msra.mxu0 0.0
        %435 = vmatprep.subr.mxu0 0.0
        %436 = vmatpush1.msra.mxu0 0.0
        %437 = vmatprep.subr.mxu0 0.0
        %438 = vmatpush1.msra.mxu0 0.0
        %439 = vmatprep.subr.mxu0 0.0
        %440 = vmatpush1.msra.mxu0 0.0
        %441 = vmatprep.subr.mxu0 0.0
        %442 = vmatpush1.msra.mxu0 0.0
        %443 = vmatprep.subr.mxu0 0.0
        %444 = vmatpush1.msra.mxu0 0.0
        %445 = vmatprep.subr.mxu0 0.0
        %446 = vmatpush1.msra.mxu0 0.0
        %447 = vmatprep.mubr.f32.mxu0 0.0
        %448 = vmatmul.mubr.f32.gmra.mrb[0].mxu0 %v381
        %v449 = vpop.f32.mrb[0].mxu0
        %v450 = vadd.f32 0.0, %v449
        %v451 = vpop.f32.mrb[0].mxu0
        %452 = vdwg.mxu0
        %453 = vrot.lane.b32.xlu0 %v284, 120
        %v454 = vpop.permute.xlu0 %453
        %455 = vrot.lane.b32.xlu0 %v284, 88
        %v456 = vpop.permute.xlu0 %455
        %v457 = vsel %vm291, %v454, 0
        %v459 = vsel %vm291, %v456, 0
        %461 = vmatprep.subr.mxu0 0.0
        %462 = vmatpush1.xpose.msra.mxu0 %v459
        %463 = vmatprep.subr.mxu0 0.0
        %464 = vmatpush1.xpose.msra.mxu0 0.0
        %465 = vmatprep.subr.mxu0 0.0
        %466 = vmatpush1.xpose.msra.mxu0 0.0
        %467 = vmatprep.subr.mxu0 0.0
        %468 = vmatpush1.xpose.msra.mxu0 0.0
        %469 = vmatprep.subr.mxu0 0.0
        %470 = vmatpush1.xpose.msra.mxu0 0.0
        %471 = vmatprep.subr.mxu0 0.0
        %472 = vmatpush1.xpose.msra.mxu0 0.0
        %473 = vmatprep.subr.mxu0 0.0
        %474 = vmatpush1.xpose.msra.mxu0 0.0
        %475 = vmatprep.subr.mxu0 0.0
        %476 = vmatpush1.xpose.msra.mxu0 0.0
        %477 = vmatprep.subr.mxu0 0.0
        %478 = vmatpush1.xpose.msra.mxu0 0.0
        %479 = vmatprep.subr.mxu0 0.0
        %480 = vmatpush1.xpose.msra.mxu0 0.0
        %481 = vmatprep.subr.mxu0 0.0
        %482 = vmatpush1.xpose.msra.mxu0 0.0
        %483 = vmatprep.subr.mxu0 0.0
        %484 = vmatpush1.xpose.msra.mxu0 0.0
        %485 = vmatprep.subr.mxu0 0.0
        %486 = vmatpush1.xpose.msra.mxu0 0.0
        %487 = vmatprep.subr.mxu0 0.0
        %488 = vmatpush1.xpose.msra.mxu0 0.0
        %489 = vmatprep.subr.mxu0 0.0
        %490 = vmatpush1.xpose.msra.mxu0 0.0
        %491 = vmatprep.subr.mxu0 0.0
        %492 = vmatpush1.xpose.msra.mxu0 0.0
        %493 = vmatprep.subr.mxu0 0.0
        %494 = vmatpush1.xpose.msra.mxu0 0.0
        %495 = vmatprep.subr.mxu0 0.0
        %496 = vmatpush1.xpose.msra.mxu0 0.0
        %497 = vmatprep.subr.mxu0 0.0
        %498 = vmatpush1.xpose.msra.mxu0 0.0
        %499 = vmatprep.subr.mxu0 0.0
        %500 = vmatpush1.xpose.msra.mxu0 0.0
        %501 = vmatprep.subr.mxu0 0.0
        %502 = vmatpush1.xpose.msra.mxu0 0.0
        %503 = vmatprep.subr.mxu0 0.0
        %504 = vmatpush1.xpose.msra.mxu0 0.0
        %505 = vmatprep.subr.mxu0 0.0
        %506 = vmatpush1.xpose.msra.mxu0 0.0
        %507 = vmatprep.subr.mxu0 0.0
        %508 = vmatpush1.xpose.msra.mxu0 0.0
        %509 = vmatprep.subr.mxu0 0.0
        %510 = vmatpush1.xpose.msra.mxu0 0.0
        %511 = vmatprep.subr.mxu0 0.0
        %512 = vmatpush1.xpose.msra.mxu0 0.0
        %513 = vmatprep.subr.mxu0 0.0
        %514 = vmatpush1.xpose.msra.mxu0 0.0
        %515 = vmatprep.subr.mxu0 0.0
        %516 = vmatpush1.xpose.msra.mxu0 0.0
        %517 = vmatprep.subr.mxu0 0.0
        %518 = vmatpush1.xpose.msra.mxu0 0.0
        %519 = vmatprep.subr.mxu0 0.0
        %520 = vmatpush1.xpose.msra.mxu0 0.0
        %521 = vmatprep.subr.mxu0 0.0
        %522 = vmatpush1.xpose.msra.mxu0 0.0
        %523 = vmatprep.subr.mxu0 0.0
        %524 = vmatpush1.xpose.msra.mxu0 0.0
        %525 = vmatprep.mubr.f32.mxu0 0.0
        %526 = vmatmul.mubr.f32.gmra.mrb[0].mxu0 %v457
        %v527 = vpop.f32.mrb[0].mxu0
        %v528 = vadd.f32 %v287, %v527
        %v529 = vpop.f32.mrb[0].mxu0
        %530 = vdwg.mxu0
        %v531 = vsel %vm291, %v528, -inf
        %532 = vmax.xlane.f32.xlu0 %v531
        %v533 = vpop.xlane.xlu0 %532
        %v534 = vsub.f32 %v528, %v533
        %v535 = vmul.f32 %v534, 1.442695
        %v536 = vpow.pop %v535
        %v537 = vsel %vm291, %v536, 0.0
        %538 = vadd.xlane.f32.xlu0 %v537
        %v539 = vpop.xlane.xlu0 %538
        %v540 = vrcp.pop %v539
        %v541 = vmul.f32 %v536, %v540
        %542 = vrot.lane.b32.xlu0 %v284, 56
        %v543 = vpop.permute.xlu0 %542
        %v546 = vsel %vm291, %v541, 0
        %548 = vmatprep.subr.mxu0 0.0
        %549 = vmatpush1.msra.mxu0 %v543
        %550 = vmatprep.subr.mxu0 0.0
        %551 = vmatpush1.msra.mxu0 0.0
        %552 = vmatprep.subr.mxu0 0.0
        %553 = vmatpush1.msra.mxu0 0.0
        %554 = vmatprep.subr.mxu0 0.0
        %555 = vmatpush1.msra.mxu0 0.0
        %556 = vmatprep.subr.mxu0 0.0
        %557 = vmatpush1.msra.mxu0 0.0
        %558 = vmatprep.subr.mxu0 0.0
        %559 = vmatpush1.msra.mxu0 0.0
        %560 = vmatprep.subr.mxu0 0.0
        %561 = vmatpush1.msra.mxu0 0.0
        %562 = vmatprep.subr.mxu0 0.0
        %563 = vmatpush1.msra.mxu0 0.0
        %564 = vmatprep.subr.mxu0 0.0
        %565 = vmatpush1.msra.mxu0 0.0
        %566 = vmatprep.subr.mxu0 0.0
        %567 = vmatpush1.msra.mxu0 0.0
        %568 = vmatprep.subr.mxu0 0.0
        %569 = vmatpush1.msra.mxu0 0.0
        %570 = vmatprep.subr.mxu0 0.0
        %571 = vmatpush1.msra.mxu0 0.0
        %572 = vmatprep.subr.mxu0 0.0
        %573 = vmatpush1.msra.mxu0 0.0
        %574 = vmatprep.subr.mxu0 0.0
        %575 = vmatpush1.msra.mxu0 0.0
        %576 = vmatprep.subr.mxu0 0.0
        %577 = vmatpush1.msra.mxu0 0.0
        %578 = vmatprep.subr.mxu0 0.0
        %579 = vmatpush1.msra.mxu0 0.0
        %580 = vmatprep.subr.mxu0 0.0
        %581 = vmatpush1.msra.mxu0 0.0
        %582 = vmatprep.subr.mxu0 0.0
        %583 = vmatpush1.msra.mxu0 0.0
        %584 = vmatprep.subr.mxu0 0.0
        %585 = vmatpush1.msra.mxu0 0.0
        %586 = vmatprep.subr.mxu0 0.0
        %587 = vmatpush1.msra.mxu0 0.0
        %588 = vmatprep.subr.mxu0 0.0
        %589 = vmatpush1.msra.mxu0 0.0
        %590 = vmatprep.subr.mxu0 0.0
        %591 = vmatpush1.msra.mxu0 0.0
        %592 = vmatprep.subr.mxu0 0.0
        %593 = vmatpush1.msra.mxu0 0.0
        %594 = vmatprep.subr.mxu0 0.0
        %595 = vmatpush1.msra.mxu0 0.0
        %596 = vmatprep.subr.mxu0 0.0
        %597 = vmatpush1.msra.mxu0 0.0
        %598 = vmatprep.subr.mxu0 0.0
        %599 = vmatpush1.msra.mxu0 0.0
        %600 = vmatprep.subr.mxu0 0.0
        %601 = vmatpush1.msra.mxu0 0.0
        %602 = vmatprep.subr.mxu0 0.0
        %603 = vmatpush1.msra.mxu0 0.0
        %604 = vmatprep.subr.mxu0 0.0
        %605 = vmatpush1.msra.mxu0 0.0
        %606 = vmatprep.subr.mxu0 0.0
        %607 = vmatpush1.msra.mxu0 0.0
        %608 = vmatprep.subr.mxu0 0.0
        %609 = vmatpush1.msra.mxu0 0.0
        %610 = vmatprep.subr.mxu0 0.0
        %611 = vmatpush1.msra.mxu0 0.0
        %612 = vmatprep.mubr.f32.mxu0 0.0
        %613 = vmatmul.mubr.f32.gmra.mrb[0].mxu0 %v546
        %v614 = vpop.f32.mrb[0].mxu0
        %v615 = vadd.f32 0.0, %v614
        %v616 = vpop.f32.mrb[0].mxu0
        %617 = vdwg.mxu0
        %618 = vrot.lane.b32.xlu0 %v284, 112
        %v619 = vpop.permute.xlu0 %618
        %620 = vrot.lane.b32.xlu0 %v284, 80
        %v621 = vpop.permute.xlu0 %620
        %v622 = vsel %vm291, %v619, 0
        %v624 = vsel %vm291, %v621, 0
        %626 = vmatprep.subr.mxu0 0.0
        %627 = vmatpush1.xpose.msra.mxu0 %v624
        %628 = vmatprep.subr.mxu0 0.0
        %629 = vmatpush1.xpose.msra.mxu0 0.0
        %630 = vmatprep.subr.mxu0 0.0
        %631 = vmatpush1.xpose.msra.mxu0 0.0
        %632 = vmatprep.subr.mxu0 0.0
        %633 = vmatpush1.xpose.msra.mxu0 0.0
        %634 = vmatprep.subr.mxu0 0.0
        %635 = vmatpush1.xpose.msra.mxu0 0.0
        %636 = vmatprep.subr.mxu0 0.0
        %637 = vmatpush1.xpose.msra.mxu0 0.0
        %638 = vmatprep.subr.mxu0 0.0
        %639 = vmatpush1.xpose.msra.mxu0 0.0
        %640 = vmatprep.subr.mxu0 0.0
        %641 = vmatpush1.xpose.msra.mxu0 0.0
        %642 = vmatprep.subr.mxu0 0.0
        %643 = vmatpush1.xpose.msra.mxu0 0.0
        %644 = vmatprep.subr.mxu0 0.0
        %645 = vmatpush1.xpose.msra.mxu0 0.0
        %646 = vmatprep.subr.mxu0 0.0
        %647 = vmatpush1.xpose.msra.mxu0 0.0
        %648 = vmatprep.subr.mxu0 0.0
        %649 = vmatpush1.xpose.msra.mxu0 0.0
        %650 = vmatprep.subr.mxu0 0.0
        %651 = vmatpush1.xpose.msra.mxu0 0.0
        %652 = vmatprep.subr.mxu0 0.0
        %653 = vmatpush1.xpose.msra.mxu0 0.0
        %654 = vmatprep.subr.mxu0 0.0
        %655 = vmatpush1.xpose.msra.mxu0 0.0
        %656 = vmatprep.subr.mxu0 0.0
        %657 = vmatpush1.xpose.msra.mxu0 0.0
        %658 = vmatprep.subr.mxu0 0.0
        %659 = vmatpush1.xpose.msra.mxu0 0.0
        %660 = vmatprep.subr.mxu0 0.0
        %661 = vmatpush1.xpose.msra.mxu0 0.0
        %662 = vmatprep.subr.mxu0 0.0
        %663 = vmatpush1.xpose.msra.mxu0 0.0
        %664 = vmatprep.subr.mxu0 0.0
        %665 = vmatpush1.xpose.msra.mxu0 0.0
        %666 = vmatprep.subr.mxu0 0.0
        %667 = vmatpush1.xpose.msra.mxu0 0.0
        %668 = vmatprep.subr.mxu0 0.0
        %669 = vmatpush1.xpose.msra.mxu0 0.0
        %670 = vmatprep.subr.mxu0 0.0
        %671 = vmatpush1.xpose.msra.mxu0 0.0
        %672 = vmatprep.subr.mxu0 0.0
        %673 = vmatpush1.xpose.msra.mxu0 0.0
        %674 = vmatprep.subr.mxu0 0.0
        %675 = vmatpush1.xpose.msra.mxu0 0.0
        %676 = vmatprep.subr.mxu0 0.0
        %677 = vmatpush1.xpose.msra.mxu0 0.0
        %678 = vmatprep.subr.mxu0 0.0
        %679 = vmatpush1.xpose.msra.mxu0 0.0
        %680 = vmatprep.subr.mxu0 0.0
        %681 = vmatpush1.xpose.msra.mxu0 0.0
        %682 = vmatprep.subr.mxu0 0.0
        %683 = vmatpush1.xpose.msra.mxu0 0.0
        %684 = vmatprep.subr.mxu0 0.0
        %685 = vmatpush1.xpose.msra.mxu0 0.0
        %686 = vmatprep.subr.mxu0 0.0
        %687 = vmatpush1.xpose.msra.mxu0 0.0
        %688 = vmatprep.subr.mxu0 0.0
        %689 = vmatpush1.xpose.msra.mxu0 0.0
        %690 = vmatprep.mubr.f32.mxu0 0.0
        %691 = vmatmul.mubr.f32.gmra.mrb[0].mxu0 %v622
        %v692 = vpop.f32.mrb[0].mxu0
        %v693 = vadd.f32 %v287, %v692
        %v694 = vpop.f32.mrb[0].mxu0
        %695 = vdwg.mxu0
        %v696 = vsel %vm291, %v693, -inf
        %697 = vmax.xlane.f32.xlu0 %v696
        %v698 = vpop.xlane.xlu0 %697
        %v699 = vsub.f32 %v693, %v698
        %v700 = vmul.f32 %v699, 1.442695
        %v701 = vpow.pop %v700
        %v702 = vsel %vm291, %v701, 0.0
        %703 = vadd.xlane.f32.xlu0 %v702
        %v704 = vpop.xlane.xlu0 %703
        %v705 = vrcp.pop %v704
        %v706 = vmul.f32 %v701, %v705
        %707 = vrot.lane.b32.xlu0 %v284, 48
        %v708 = vpop.permute.xlu0 %707
        %v711 = vsel %vm291, %v706, 0
        %713 = vmatprep.subr.mxu0 0.0
        %714 = vmatpush1.msra.mxu0 %v708
        %715 = vmatprep.subr.mxu0 0.0
        %716 = vmatpush1.msra.mxu0 0.0
        %717 = vmatprep.subr.mxu0 0.0
        %718 = vmatpush1.msra.mxu0 0.0
        %719 = vmatprep.subr.mxu0 0.0
        %720 = vmatpush1.msra.mxu0 0.0
        %721 = vmatprep.subr.mxu0 0.0
        %722 = vmatpush1.msra.mxu0 0.0
        %723 = vmatprep.subr.mxu0 0.0
        %724 = vmatpush1.msra.mxu0 0.0
        %725 = vmatprep.subr.mxu0 0.0
        %726 = vmatpush1.msra.mxu0 0.0
        %727 = vmatprep.subr.mxu0 0.0
        %728 = vmatpush1.msra.mxu0 0.0
        %729 = vmatprep.subr.mxu0 0.0
        %730 = vmatpush1.msra.mxu0 0.0
        %731 = vmatprep.subr.mxu0 0.0
        %732 = vmatpush1.msra.mxu0 0.0
        %733 = vmatprep.subr.mxu0 0.0
        %734 = vmatpush1.msra.mxu0 0.0
        %735 = vmatprep.subr.mxu0 0.0
        %736 = vmatpush1.msra.mxu0 0.0
        %737 = vmatprep.subr.mxu0 0.0
        %738 = vmatpush1.msra.mxu0 0.0
        %739 = vmatprep.subr.mxu0 0.0
        %740 = vmatpush1.msra.mxu0 0.0
        %741 = vmatprep.subr.mxu0 0.0
        %742 = vmatpush1.msra.mxu0 0.0
        %743 = vmatprep.subr.mxu0 0.0
        %744 = vmatpush1.msra.mxu0 0.0
        %745 = vmatprep.subr.mxu0 0.0
        %746 = vmatpush1.msra.mxu0 0.0
        %747 = vmatprep.subr.mxu0 0.0
        %748 = vmatpush1.msra.mxu0 0.0
        %749 = vmatprep.subr.mxu0 0.0
        %750 = vmatpush1.msra.mxu0 0.0
        %751 = vmatprep.subr.mxu0 0.0
        %752 = vmatpush1.msra.mxu0 0.0
        %753 = vmatprep.subr.mxu0 0.0
        %754 = vmatpush1.msra.mxu0 0.0
        %755 = vmatprep.subr.mxu0 0.0
        %756 = vmatpush1.msra.mxu0 0.0
        %757 = vmatprep.subr.mxu0 0.0
        %758 = vmatpush1.msra.mxu0 0.0
        %759 = vmatprep.subr.mxu0 0.0
        %760 = vmatpush1.msra.mxu0 0.0
        %761 = vmatprep.subr.mxu0 0.0
        %762 = vmatpush1.msra.mxu0 0.0
        %763 = vmatprep.subr.mxu0 0.0
        %764 = vmatpush1.msra.mxu0 0.0
        %765 = vmatprep.subr.mxu0 0.0
        %766 = vmatpush1.msra.mxu0 0.0
        %767 = vmatprep.subr.mxu0 0.0
        %768 = vmatpush1.msra.mxu0 0.0
        %769 = vmatprep.subr.mxu0 0.0
        %770 = vmatpush1.msra.mxu0 0.0
        %771 = vmatprep.subr.mxu0 0.0
        %772 = vmatpush1.msra.mxu0 0.0
        %773 = vmatprep.subr.mxu0 0.0
        %774 = vmatpush1.msra.mxu0 0.0
        %775 = vmatprep.subr.mxu0 0.0
        %776 = vmatpush1.msra.mxu0 0.0
        %777 = vmatprep.mubr.f32.mxu0 0.0
        %778 = vmatmul.mubr.f32.gmra.mrb[0].mxu0 %v711
        %v779 = vpop.f32.mrb[0].mxu0
        %v780 = vadd.f32 0.0, %v779
        %v781 = vpop.f32.mrb[0].mxu0
        %782 = vdwg.mxu0
        %783 = vrot.lane.b32.xlu0 %v284, 104
        %v784 = vpop.permute.xlu0 %783
        %785 = vrot.lane.b32.xlu0 %v284, 72
        %v786 = vpop.permute.xlu0 %785
        %v787 = vsel %vm291, %v784, 0
        %v789 = vsel %vm291, %v786, 0
        %791 = vmatprep.subr.mxu0 0.0
        %792 = vmatpush1.xpose.msra.mxu0 %v789
        %793 = vmatprep.subr.mxu0 0.0
        %794 = vmatpush1.xpose.msra.mxu0 0.0
        %795 = vmatprep.subr.mxu0 0.0
        %796 = vmatpush1.xpose.msra.mxu0 0.0
        %797 = vmatprep.subr.mxu0 0.0
        %798 = vmatpush1.xpose.msra.mxu0 0.0
        %799 = vmatprep.subr.mxu0 0.0
        %800 = vmatpush1.xpose.msra.mxu0 0.0
        %801 = vmatprep.subr.mxu0 0.0
        %802 = vmatpush1.xpose.msra.mxu0 0.0
        %803 = vmatprep.subr.mxu0 0.0
        %804 = vmatpush1.xpose.msra.mxu0 0.0
        %805 = vmatprep.subr.mxu0 0.0
        %806 = vmatpush1.xpose.msra.mxu0 0.0
        %807 = vmatprep.subr.mxu0 0.0
        %808 = vmatpush1.xpose.msra.mxu0 0.0
        %809 = vmatprep.subr.mxu0 0.0
        %810 = vmatpush1.xpose.msra.mxu0 0.0
        %811 = vmatprep.subr.mxu0 0.0
        %812 = vmatpush1.xpose.msra.mxu0 0.0
        %813 = vmatprep.subr.mxu0 0.0
        %814 = vmatpush1.xpose.msra.mxu0 0.0
        %815 = vmatprep.subr.mxu0 0.0
        %816 = vmatpush1.xpose.msra.mxu0 0.0
        %817 = vmatprep.subr.mxu0 0.0
        %818 = vmatpush1.xpose.msra.mxu0 0.0
        %819 = vmatprep.subr.mxu0 0.0
        %820 = vmatpush1.xpose.msra.mxu0 0.0
        %821 = vmatprep.subr.mxu0 0.0
        %822 = vmatpush1.xpose.msra.mxu0 0.0
        %823 = vmatprep.subr.mxu0 0.0
        %824 = vmatpush1.xpose.msra.mxu0 0.0
        %825 = vmatprep.subr.mxu0 0.0
        %826 = vmatpush1.xpose.msra.mxu0 0.0
        %827 = vmatprep.subr.mxu0 0.0
        %828 = vmatpush1.xpose.msra.mxu0 0.0
        %829 = vmatprep.subr.mxu0 0.0
        %830 = vmatpush1.xpose.msra.mxu0 0.0
        %831 = vmatprep.subr.mxu0 0.0
        %832 = vmatpush1.xpose.msra.mxu0 0.0
        %833 = vmatprep.subr.mxu0 0.0
        %834 = vmatpush1.xpose.msra.mxu0 0.0
        %835 = vmatprep.subr.mxu0 0.0
        %836 = vmatpush1.xpose.msra.mxu0 0.0
        %837 = vmatprep.subr.mxu0 0.0
        %838 = vmatpush1.xpose.msra.mxu0 0.0
        %839 = vmatprep.subr.mxu0 0.0
        %840 = vmatpush1.xpose.msra.mxu0 0.0
        %841 = vmatprep.subr.mxu0 0.0
        %842 = vmatpush1.xpose.msra.mxu0 0.0
        %843 = vmatprep.subr.mxu0 0.0
        %844 = vmatpush1.xpose.msra.mxu0 0.0
        %845 = vmatprep.subr.mxu0 0.0
        %846 = vmatpush1.xpose.msra.mxu0 0.0
        %847 = vmatprep.subr.mxu0 0.0
        %848 = vmatpush1.xpose.msra.mxu0 0.0
        %849 = vmatprep.subr.mxu0 0.0
        %850 = vmatpush1.xpose.msra.mxu0 0.0
        %851 = vmatprep.subr.mxu0 0.0
        %852 = vmatpush1.xpose.msra.mxu0 0.0
        %853 = vmatprep.subr.mxu0 0.0
        %854 = vmatpush1.xpose.msra.mxu0 0.0
        %855 = vmatprep.mubr.f32.mxu0 0.0
        %856 = vmatmul.mubr.f32.gmra.mrb[0].mxu0 %v787
        %v857 = vpop.f32.mrb[0].mxu0
        %v858 = vadd.f32 %v287, %v857
        %v859 = vpop.f32.mrb[0].mxu0
        %860 = vdwg.mxu0
        %v861 = vsel %vm291, %v858, -inf
        %862 = vmax.xlane.f32.xlu0 %v861
        %v863 = vpop.xlane.xlu0 %862
        %v864 = vsub.f32 %v858, %v863
        %v865 = vmul.f32 %v864, 1.442695
        %v866 = vpow.pop %v865
        %v867 = vsel %vm291, %v866, 0.0
        %868 = vadd.xlane.f32.xlu0 %v867
        %v869 = vpop.xlane.xlu0 %868
        %v870 = vrcp.pop %v869
        %v871 = vmul.f32 %v866, %v870
        %872 = vrot.lane.b32.xlu0 %v284, 40
        %v873 = vpop.permute.xlu0 %872
        %v876 = vsel %vm291, %v871, 0
        %878 = vmatprep.subr.mxu0 0.0
        %879 = vmatpush1.msra.mxu0 %v873
        %880 = vmatprep.subr.mxu0 0.0
        %881 = vmatpush1.msra.mxu0 0.0
        %882 = vmatprep.subr.mxu0 0.0
        %883 = vmatpush1.msra.mxu0 0.0
        %884 = vmatprep.subr.mxu0 0.0
        %885 = vmatpush1.msra.mxu0 0.0
        %886 = vmatprep.subr.mxu0 0.0
        %887 = vmatpush1.msra.mxu0 0.0
        %888 = vmatprep.subr.mxu0 0.0
        %889 = vmatpush1.msra.mxu0 0.0
        %890 = vmatprep.subr.mxu0 0.0
        %891 = vmatpush1.msra.mxu0 0.0
        %892 = vmatprep.subr.mxu0 0.0
        %893 = vmatpush1.msra.mxu0 0.0
        %894 = vmatprep.subr.mxu0 0.0
        %895 = vmatpush1.msra.mxu0 0.0
        %896 = vmatprep.subr.mxu0 0.0
        %897 = vmatpush1.msra.mxu0 0.0
        %898 = vmatprep.subr.mxu0 0.0
        %899 = vmatpush1.msra.mxu0 0.0
        %900 = vmatprep.subr.mxu0 0.0
        %901 = vmatpush1.msra.mxu0 0.0
        %902 = vmatprep.subr.mxu0 0.0
        %903 = vmatpush1.msra.mxu0 0.0
        %904 = vmatprep.subr.mxu0 0.0
        %905 = vmatpush1.msra.mxu0 0.0
        %906 = vmatprep.subr.mxu0 0.0
        %907 = vmatpush1.msra.mxu0 0.0
        %908 = vmatprep.subr.mxu0 0.0
        %909 = vmatpush1.msra.mxu0 0.0
        %910 = vmatprep.subr.mxu0 0.0
        %911 = vmatpush1.msra.mxu0 0.0
        %912 = vmatprep.subr.mxu0 0.0
        %913 = vmatpush1.msra.mxu0 0.0
        %914 = vmatprep.subr.mxu0 0.0
        %915 = vmatpush1.msra.mxu0 0.0
        %916 = vmatprep.subr.mxu0 0.0
        %917 = vmatpush1.msra.mxu0 0.0
        %918 = vmatprep.subr.mxu0 0.0
        %919 = vmatpush1.msra.mxu0 0.0
        %920 = vmatprep.subr.mxu0 0.0
        %921 = vmatpush1.msra.mxu0 0.0
        %922 = vmatprep.subr.mxu0 0.0
        %923 = vmatpush1.msra.mxu0 0.0
        %924 = vmatprep.subr.mxu0 0.0
        %925 = vmatpush1.msra.mxu0 0.0
        %926 = vmatprep.subr.mxu0 0.0
        %927 = vmatpush1.msra.mxu0 0.0
        %928 = vmatprep.subr.mxu0 0.0
        %929 = vmatpush1.msra.mxu0 0.0
        %930 = vmatprep.subr.mxu0 0.0
        %931 = vmatpush1.msra.mxu0 0.0
        %932 = vmatprep.subr.mxu0 0.0
        %933 = vmatpush1.msra.mxu0 0.0
        %934 = vmatprep.subr.mxu0 0.0
        %935 = vmatpush1.msra.mxu0 0.0
        %936 = vmatprep.subr.mxu0 0.0
        %937 = vmatpush1.msra.mxu0 0.0
        %938 = vmatprep.subr.mxu0 0.0
        %939 = vmatpush1.msra.mxu0 0.0
        %940 = vmatprep.subr.mxu0 0.0
        %941 = vmatpush1.msra.mxu0 0.0
        %942 = vmatprep.mubr.f32.mxu0 0.0
        %943 = vmatmul.mubr.f32.gmra.mrb[0].mxu0 %v876
        %v944 = vpop.f32.mrb[0].mxu0
        %v945 = vadd.f32 0.0, %v944
        %v946 = vpop.f32.mrb[0].mxu0
        %947 = vdwg.mxu0
        %949 = vrot.lane.b32.xlu0 %v615, 8
        %v950 = vpop.permute.xlu0 %949
        %953 = vrot.lane.b32.xlu0 %v780, 16
        %v954 = vpop.permute.xlu0 %953
        %957 = vrot.lane.b32.xlu0 %v945, 24
        %v958 = vpop.permute.xlu0 %957
        %v960 = vsel %vm291, %v450, %v950
        %vm961 = vcmask 130048
        %v962 = vsel %vm961, %v960, %v954
        %vm963 = vcmask 195584
        %v964 = vsel %vm963, %v962, %v958
        %v965 = vld [vmem:[%s1 + $0x60] sm:$0xff]
        %v966 = vld [vmem:[%s1 + $0x68] sm:$0xff]
        %v967 = vld [vmem:[%s1 + $0x70] sm:$0xff]
        %v968 = vld [vmem:[%s1 + $0x78] sm:$0xff]
        %969 = vrot.lane.b32.xlu0 %v211, 32
        %v970 = vpop.permute.xlu0 %969
        %vm972 = vcmask 261120
        %v974 = vsel %vm972, %v964, 0
        %976 = vmatprep.subr.mxu0 0.0
        %977 = vmatpush1.msra.mxu0 %v965
        %978 = vmatprep.subr.mxu0 0.0
        %979 = vmatpush1.msra.mxu0 %v966
        %980 = vmatprep.subr.mxu0 0.0
        %981 = vmatpush1.msra.mxu0 %v967
        %982 = vmatprep.subr.mxu0 0.0
        %983 = vmatpush1.msra.mxu0 %v968
        %984 = vmatprep.subr.mxu0 0.0
        %985 = vmatpush1.msra.mxu0 0.0
        %986 = vmatprep.subr.mxu0 0.0
        %987 = vmatpush1.msra.mxu0 0.0
        %988 = vmatprep.subr.mxu0 0.0
        %989 = vmatpush1.msra.mxu0 0.0
        %990 = vmatprep.subr.mxu0 0.0
        %991 = vmatpush1.msra.mxu0 0.0
        %992 = vmatprep.subr.mxu0 0.0
        %993 = vmatpush1.msra.mxu0 0.0
        %994 = vmatprep.subr.mxu0 0.0
        %995 = vmatpush1.msra.mxu0 0.0
        %996 = vmatprep.subr.mxu0 0.0
        %997 = vmatpush1.msra.mxu0 0.0
        %998 = vmatprep.subr.mxu0 0.0
        %999 = vmatpush1.msra.mxu0 0.0
        %1000 = vmatprep.subr.mxu0 0.0
        %1001 = vmatpush1.msra.mxu0 0.0
        %1002 = vmatprep.subr.mxu0 0.0
        %1003 = vmatpush1.msra.mxu0 0.0
        %1004 = vmatprep.subr.mxu0 0.0
        %1005 = vmatpush1.msra.mxu0 0.0
        %1006 = vmatprep.subr.mxu0 0.0
        %1007 = vmatpush1.msra.mxu0 0.0
        %1008 = vmatprep.subr.mxu0 0.0
        %1009 = vmatpush1.msra.mxu0 0.0
        %1010 = vmatprep.subr.mxu0 0.0
        %1011 = vmatpush1.msra.mxu0 0.0
        %1012 = vmatprep.subr.mxu0 0.0
        %1013 = vmatpush1.msra.mxu0 0.0
        %1014 = vmatprep.subr.mxu0 0.0
        %1015 = vmatpush1.msra.mxu0 0.0
        %1016 = vmatprep.subr.mxu0 0.0
        %1017 = vmatpush1.msra.mxu0 0.0
        %1018 = vmatprep.subr.mxu0 0.0
        %1019 = vmatpush1.msra.mxu0 0.0
        %1020 = vmatprep.subr.mxu0 0.0
        %1021 = vmatpush1.msra.mxu0 0.0
        %1022 = vmatprep.subr.mxu0 0.0
        %1023 = vmatpush1.msra.mxu0 0.0
        %1024 = vmatprep.subr.mxu0 0.0
        %1025 = vmatpush1.msra.mxu0 0.0
        %1026 = vmatprep.subr.mxu0 0.0
        %1027 = vmatpush1.msra.mxu0 0.0
        %1028 = vmatprep.subr.mxu0 0.0
        %1029 = vmatpush1.msra.mxu0 0.0
        %1030 = vmatprep.subr.mxu0 0.0
        %1031 = vmatpush1.msra.mxu0 0.0
        %1032 = vmatprep.subr.mxu0 0.0
        %1033 = vmatpush1.msra.mxu0 0.0
        %1034 = vmatprep.subr.mxu0 0.0
        %1035 = vmatpush1.msra.mxu0 0.0
        %1036 = vmatprep.subr.mxu0 0.0
        %1037 = vmatpush1.msra.mxu0 0.0
        %1038 = vmatprep.subr.mxu0 0.0
        %1039 = vmatpush1.msra.mxu0 0.0
        %1040 = vmatprep.mubr.f32.mxu0 0.0
        %1041 = vmatmul.mubr.f32.gmra.mrb[0].mxu0 %v974
        %v1042 = vpop.f32.mrb[0].mxu0
        %v1043 = vadd.f32 %v970, %v1042
        %v1044 = vpop.f32.mrb[0].mxu0
        %1045 = vdwg.mxu0
        %1046 = vst.msk [vmem:[%s188] sm:$0xff] %vm972, %v1043
        %s1047 = sand.u32 %s115, 1
        %s1048 = scalar_lea.sflag [#allocation3], %s1047
        %s1049 = sand.u32 %s115, 1
        %s1050 = smul.addr %s1049, 8
        %s1051 = scalar_lea.vmem [#allocation2], %s1050
        // Predicated region
        $region37: #{multi_head_attention.1} parent=35 // pred_check
          %p1052 = pneg %p125
        $region38: #{multi_head_attention.1} parent=35 // pred_check_branch
          %1054 = sbr.rel (%p1052) target = $region40
        $region39: #{multi_head_attention.1} parent=35 // pred_region
          %s1056 = ssub.s32 128, 128
          %1057 = vsyncadd %s1048, %s1056
          %s1058 = smul.addr %s18, 128
          %s1059 = scalar_lea.hbm %s4, %s1058
          %s1061 = sshll.u32 %s1051, 4
          %s1062 = int_to_ptr.vmem [resolvable:$true] %s1061
          %1064 = dma.vmem_to_hbm [thread:$0]  %s1062, 128, %s1059, %s1048
        $region40: #{multi_head_attention.1} parent=35 // pred_fallthru
          _
      $region36: #{multi_head_attention.1} parent=5 // pred_fallthru
        _
      %p1065 = scmp.le.s32.totalorder 2, %s13
      // Predicated region
      $region41: #{multi_head_attention.1} parent=5 // pred_check
        %p1066 = pneg %p1065
      $region42: #{multi_head_attention.1} parent=5 // pred_check_branch
        %1068 = sbr.rel (%p1066) target = $region44
      $region43: #{multi_head_attention.1} parent=5 // pred_region
        %s1069 = ssub.s32 %s13, 2
        // Predicated region
        $region45: #{multi_head_attention.1} parent=43 // pred_check
          %p1070 = pneg %p131
        $region46: #{multi_head_attention.1} parent=43 // pred_check_branch
          %1072 = sbr.rel (%p1070) target = $region48
        $region47: #{multi_head_attention.1} parent=43 // pred_region
          %s1073 = sand.u32 %s116, 1
          %s1074 = scalar_lea.sflag [#allocation3], %s1073
          %s1075 = sand.u32 %s116, 1
          %s1076 = smul.addr %s1075, 8
          %s1077 = scalar_lea.vmem [#allocation2], %s1076
          %1078 = dma.done %s1074, 128
        $region48: #{multi_head_attention.1} parent=43 // pred_fallthru
          _
      $region44: #{multi_head_attention.1} parent=5 // pred_fallthru
        _
    $region6: #{multi_head_attention.1} parent=1 // loop_footer
      %s17 = sadd.s32 1, %s13
    $region7: #{multi_head_attention.1} parent=1 // loop_footer_branch
      %12 = sbr.rel target = $region3
    $region8: #{multi_head_attention.1} parent=1 // loop_exit
      _
    %1079 = vsyncpa [#allocation3], 1
    %s1080 = scalar_lea.sflag [#allocation3], 1
    %1081 = vsyncpa %s1080, 1

</llo_original>
